<compile_context>
chip_gen: v7x
topology: tpu7x:2x2x1
jax: 0.10.0
libtpu: 0.0.40
codegen_flags: <defaults>
</compile_context>

<pallas_src>
import jax
import jax.numpy as jnp
from jax.experimental import pallas as pl
from jax.experimental.pallas import tpu as pltpu


# ----------------------------- Pallas kernel ---------------------------------

def _score_mlp_kernel(x_ref, w1_ref, b1_ref, w2_ref, b2_ref, w3_ref, b3_ref, out_ref):
    # hidden layer 1: (branch projections + Linear + BN(eval)) folded into w1/b1, then ReLU
    h = jnp.dot(x_ref[...], w1_ref[...], preferred_element_type=jnp.float32)
    h = jnp.maximum(h + b1_ref[...], 0.0)

    # hidden layer 2: (Linear + BN(eval)) folded into w2/b2, then ReLU
    h = jnp.dot(h.astype(w2_ref.dtype), w2_ref[...], preferred_element_type=jnp.float32)
    h = jnp.maximum(h + b2_ref[...], 0.0)

    # output Linear(H, 1) + Sigmoid, computed as (1,H) @ (H,TM) -> (1,TM) so the store
    # is a full-width lane-dense store instead of a degenerate lane-1 masked store.
    logit = jnp.dot(w3_ref[...], h.T, preferred_element_type=jnp.float32) + b3_ref[0, 0]
    out_ref[...] = jax.nn.sigmoid(logit)                                   # (1, TM)


def fused_score_mlp(x_flat, kp, *, tile_rows=512):
    """x_flat: (N, in_channel) -> scores (N,) float32 via the fused score MLP."""
    n, cin = x_flat.shape
    hidden = kp["w1"].shape[1]

    # Row tile: multiple of 128 (lane-dense output, bf16 sublane-friendly), capped at 512.
    tm = min(tile_rows, ((n + 127) // 128) * 128)
    n_pad = ((n + tm - 1) // tm) * tm
    x = jnp.pad(x_flat, ((0, n_pad - n), (0, 0))).astype(jnp.bfloat16)

    out = pl.pallas_call(
        _score_mlp_kernel,
        out_shape=jax.ShapeDtypeStruct((1, n_pad), jnp.float32),
        grid=(n_pad // tm,),
        in_specs=[
            pl.BlockSpec((tm, cin), lambda i: (i, 0)),          # x row tile (pipelined)
            pl.BlockSpec((cin, hidden), lambda i: (0, 0)),      # W1'  (resident)
            pl.BlockSpec((1, hidden), lambda i: (0, 0)),        # b1'  (resident)
            pl.BlockSpec((hidden, hidden), lambda i: (0, 0)),   # W2'  (resident)
            pl.BlockSpec((1, hidden), lambda i: (0, 0)),        # b2'  (resident)
            pl.BlockSpec((1, hidden), lambda i: (0, 0)),        # w3^T (resident)
            pl.BlockSpec(memory_space=pltpu.MemorySpace.SMEM),  # b3 scalar
        ],
        out_specs=pl.BlockSpec((1, tm), lambda i: (0, i)),      # lane-dense output slab
        compiler_params=pltpu.CompilerParams(
            dimension_semantics=("parallel",)),
    )(x, kp["w1"], kp["b1"], kp["w2"], kp["b2"], kp["w3"], kp["b3"])
    return out[0, :n]


# ----------------------------- parameter setup --------------------------------

def init_params(key, in_channel, similarity_dim, hidden_dim):
    ks = jax.random.split(key, 16)

    def kaiming(k, fan_in, shape):
        # nn.init.kaiming_normal_ (fan_in, relu): std = sqrt(2 / fan_in)
        return jax.random.normal(k, shape, jnp.float32) * jnp.sqrt(2.0 / fan_in)

    def bn_fold(kg, kb, km, kv, dim):
        # BatchNorm1d eval-mode (running stats), folded into per-channel scale/shift.
        gamma = 1.0 + 0.1 * jax.random.normal(kg, (1, dim), jnp.float32)
        beta = 0.1 * jax.random.normal(kb, (1, dim), jnp.float32)
        r_mean = 0.1 * jax.random.normal(km, (1, dim), jnp.float32)
        r_var = 1.0 + 0.1 * jnp.abs(jax.random.normal(kv, (1, dim), jnp.float32))
        scale = gamma / jnp.sqrt(r_var + 1e-5)
        shift = beta - r_mean * scale
        return scale, shift

    # raw parameters (weights stored (in, out) so forward computes x @ W + b)
    w1 = kaiming(ks[0], similarity_dim, (similarity_dim, hidden_dim))
    b1 = 0.01 * jax.random.normal(ks[1], (1, hidden_dim), jnp.float32)
    s1, t1 = bn_fold(ks[2], ks[3], ks[4], ks[5], hidden_dim)

    w2 = kaiming(ks[6], hidden_dim, (hidden_dim, hidden_dim))
    b2 = 0.01 * jax.random.normal(ks[7], (1, hidden_dim), jnp.float32)
    s2, t2 = bn_fold(ks[8], ks[9], ks[10], ks[11], hidden_dim)

    w3 = kaiming(ks[12], hidden_dim, (hidden_dim, 1))
    b3 = 0.01 * jax.random.normal(ks[13], (1, 1), jnp.float32)

    # TODO(synk): GraphStream / SlowFastFusion / SimilarityModule sources unavailable;
    # each similarity branch is a deterministic linear stand-in frame_features -> similarity.
    wp_slow = kaiming(ks[14], in_channel, (in_channel, similarity_dim))
    wp_fast = kaiming(ks[15], in_channel, (in_channel, similarity_dim))

    # ---- one-time inference folding (removes 2 HBM-round-trip projections + BN passes) ----
    # topic_similar = flat @ (wp_slow + wp_fast); BN(eval) is a per-column scale/shift.
    w1_eff = ((wp_slow + wp_fast) @ (w1 * s1)).astype(jnp.bfloat16)   # (in_channel, H)
    b1_eff = b1 * s1 + t1                                             # (1, H) f32
    w2_eff = (w2 * s2).astype(jnp.bfloat16)                           # (H, H)
    b2_eff = b2 * s2 + t2                                             # (1, H) f32
    w3_eff = w3.T                                                     # (1, H) f32
    b3_eff = b3                                                       # (1, 1) f32 (SMEM scalar)

    return {"w1": w1_eff, "b1": b1_eff,
            "w2": w2_eff, "b2": b2_eff,
            "w3": w3_eff, "b3": b3_eff}


# ----------------------------- forward wrapper ---------------------------------

def middle_fusion_score_net_forward(params, batch, seg_len, concept1, concept2,
                                    topic_embeddings, video_features, frame_features,
                                    slow_features, fast_features):
    """Mirrors MiddleFusionScoreNet.forward; returns (overall_scores, overall_scores)."""
    B, T, C = frame_features.shape
    flat = frame_features.reshape(B * T, C).astype(jnp.float32)

    # slow/fast similarity branches are folded into the kernel's first weight (see init);
    # topic_similar = slow + fast ; overall_scores = score_mlp(topic_similar).squeeze(-1)
    scores = fused_score_mlp(flat, params)            # (B*T,)
    overall_scores = scores.reshape(B, T)             # squeeze(dim=-1)
    return overall_scores, overall_scores


# ----------------------------------- main --------------------------------------

if __name__ == "__main__":
    # Small, module-consistent shapes.
    B = 2                   # batch
    T = 16                  # n_frames
    in_channel = 64         # frame feature dim
    similarity_dim = 128
    hidden_dim = 128        # score_mlp_hidden_dim
    topic_num = 4
    topic_embedding_dim = 32

    key = jax.random.PRNGKey(0)
    k_par, k_ff, k_te, k_vf, k_sf, k_fa, k_c1, k_c2 = jax.random.split(key, 8)

    params = init_params(k_par, in_channel, similarity_dim, hidden_dim)

    seg_len = jnp.full((B,), T, dtype=jnp.int32)
    concept1 = jax.random.normal(k_c1, (B, 300), jnp.float32)
    concept2 = jax.random.normal(k_c2, (B, 300), jnp.float32)
    topic_embeddings = jax.random.normal(k_te, (B, topic_num, topic_embedding_dim), jnp.float32)
    video_features = jax.random.normal(k_vf, (B, T, in_channel), jnp.float32)
    frame_features = jax.random.normal(k_ff, (B, T, in_channel), jnp.float32)
    slow_features = jax.random.normal(k_sf, (B, T // 2, in_channel), jnp.float32)
    fast_features = jax.random.normal(k_fa, (B, T, in_channel), jnp.float32)

    overall_scores, _ = middle_fusion_score_net_forward(
        params, B, seg_len, concept1, concept2, topic_embeddings,
        video_features, frame_features, slow_features, fast_features)
    overall_scores = jax.block_until_ready(overall_scores)

    assert overall_scores.shape == (B, T)
    assert bool(jnp.all(jnp.isfinite(overall_scores)))
    assert bool(jnp.all((overall_scores >= 0.0) & (overall_scores <= 1.0)))  # sigmoid range
    print("KERNEL_OK")
</pallas_src>

<mosaic_0001>
module attributes {stable_mosaic.version = 11 : i64} {
  func.func @_score_mlp_kernel(%arg0: i32, %arg1: memref<128x64xbf16, #tpu.memory_space<vmem>>, %arg2: memref<64x128xbf16, #tpu.memory_space<vmem>>, %arg3: memref<1x128xf32, #tpu.memory_space<vmem>>, %arg4: memref<128x128xbf16, #tpu.memory_space<vmem>>, %arg5: memref<1x128xf32, #tpu.memory_space<vmem>>, %arg6: memref<1x128xf32, #tpu.memory_space<vmem>>, %arg7: memref<1x1xf32, #tpu.memory_space<smem>>, %arg8: memref<1x128xf32, #tpu.memory_space<vmem>>) attributes {dimension_semantics = [#tpu.dimension_semantics<parallel>], iteration_bounds = array<i64: 1>, scalar_prefetch = 0 : i64, scratch_operands = 0 : i64, tpu.core_type = #tpu.core_type<tc>, window_params = [{transform_indices = @transform_0, window_bounds = array<i64: 128, 64>}, {pipeline_mode = #tpu.pipeline_mode<synchronous>, transform_indices = @transform_1, window_bounds = array<i64: 64, 128>}, {pipeline_mode = #tpu.pipeline_mode<synchronous>, transform_indices = @transform_2, window_bounds = array<i64: 1, 128>}, {pipeline_mode = #tpu.pipeline_mode<synchronous>, transform_indices = @transform_3, window_bounds = array<i64: 128, 128>}, {pipeline_mode = #tpu.pipeline_mode<synchronous>, transform_indices = @transform_4, window_bounds = array<i64: 1, 128>}, {pipeline_mode = #tpu.pipeline_mode<synchronous>, transform_indices = @transform_5, window_bounds = array<i64: 1, 128>}, {transform_indices = @transform_6, window_bounds = array<i64: 1, 1>}, {transform_indices = @transform_7, window_bounds = array<i64: 1, 128>}]} {
    %c0 = arith.constant 0 : index
    %c0_0 = arith.constant 0 : index
    %0 = vector.load %arg1[%c0, %c0_0] : memref<128x64xbf16, #tpu.memory_space<vmem>>, vector<128x64xbf16>
    %c0_1 = arith.constant 0 : index
    %c0_2 = arith.constant 0 : index
    %1 = vector.load %arg2[%c0_1, %c0_2] : memref<64x128xbf16, #tpu.memory_space<vmem>>, vector<64x128xbf16>
    %cst = arith.constant dense<0.000000e+00> : vector<128x128xf32>
    %2 = tpu.matmul %0, %1, %cst {dimension_numbers = #tpu.dot_dimension_numbers<[1], [0], [0], [1], [0, 0, 1, 1], [], []>} : vector<128x64xbf16>, vector<64x128xbf16>, vector<128x128xf32> -> vector<128x128xf32>
    %c0_3 = arith.constant 0 : index
    %c0_4 = arith.constant 0 : index
    %3 = vector.load %arg3[%c0_3, %c0_4] : memref<1x128xf32, #tpu.memory_space<vmem>>, vector<1x128xf32>
    %4 = vector.broadcast %3 : vector<1x128xf32> to vector<128x128xf32>
    %5 = arith.addf %2, %4 : vector<128x128xf32>
    %cst_5 = arith.constant 0.000000e+00 : f32
    %6 = vector.broadcast %cst_5 : f32 to vector<128x128xf32>
    %7 = arith.maximumf %5, %6 : vector<128x128xf32>
    %8 = arith.truncf %7 : vector<128x128xf32> to vector<128x128xbf16>
    %c0_6 = arith.constant 0 : index
    %c0_7 = arith.constant 0 : index
    %9 = vector.load %arg4[%c0_6, %c0_7] : memref<128x128xbf16, #tpu.memory_space<vmem>>, vector<128x128xbf16>
    %cst_8 = arith.constant dense<0.000000e+00> : vector<128x128xf32>
    %10 = tpu.matmul %8, %9, %cst_8 {dimension_numbers = #tpu.dot_dimension_numbers<[1], [0], [0], [1], [0, 0, 1, 1], [], []>} : vector<128x128xbf16>, vector<128x128xbf16>, vector<128x128xf32> -> vector<128x128xf32>
    %c0_9 = arith.constant 0 : index
    %c0_10 = arith.constant 0 : index
    %11 = vector.load %arg5[%c0_9, %c0_10] : memref<1x128xf32, #tpu.memory_space<vmem>>, vector<1x128xf32>
    %12 = vector.broadcast %11 : vector<1x128xf32> to vector<128x128xf32>
    %13 = arith.addf %10, %12 : vector<128x128xf32>
    %cst_11 = arith.constant 0.000000e+00 : f32
    %14 = vector.broadcast %cst_11 : f32 to vector<128x128xf32>
    %15 = arith.maximumf %13, %14 : vector<128x128xf32>
    %c0_12 = arith.constant 0 : index
    %c0_13 = arith.constant 0 : index
    %16 = vector.load %arg6[%c0_12, %c0_13] : memref<1x128xf32, #tpu.memory_space<vmem>>, vector<1x128xf32>
    %17 = tpu.transpose %15, [1, 0] : vector<128x128xf32> -> vector<128x128xf32>
    %cst_14 = arith.constant dense<0.000000e+00> : vector<1x128xf32>
    %18 = tpu.matmul %16, %17, %cst_14 {dimension_numbers = #tpu.dot_dimension_numbers<[1], [0], [0], [1], [0, 0, 1, 1], [], []>} : vector<1x128xf32>, vector<128x128xf32>, vector<1x128xf32> -> vector<1x128xf32>
    %c0_15 = arith.constant 0 : index
    %c0_16 = arith.constant 0 : index
    %19 = memref.load %arg7[%c0_15, %c0_16] : memref<1x1xf32, #tpu.memory_space<smem>>
    %20 = vector.broadcast %19 : f32 to vector<1x128xf32>
    %21 = arith.addf %18, %20 : vector<1x128xf32>
    %22 = arith.negf %21 : vector<1x128xf32>
    %23 = math.exp %22 : vector<1x128xf32>
    %cst_17 = arith.constant 1.000000e+00 : f32
    %24 = vector.broadcast %cst_17 : f32 to vector<1x128xf32>
    %25 = arith.addf %24, %23 : vector<1x128xf32>
    %26 = arith.divf %24, %25 : vector<1x128xf32>
    %c0_18 = arith.constant 0 : index
    %c0_19 = arith.constant 0 : index
    %27 = vector.load %arg8[%c0_18, %c0_19] : memref<1x128xf32, #tpu.memory_space<vmem>>, vector<1x128xf32>
    tpu.vector_store %arg8[%c0_18, %c0_19], %26 {strides = array<i32>} : memref<1x128xf32, #tpu.memory_space<vmem>>, vector<1x128xf32>,
    return
  }
  func.func @transform_0(%arg0: i32) -> (i32, i32) {
    %c0_i32 = arith.constant 0 : i32
    %c0_i32_0 = arith.constant 0 : i32
    return %arg0, %c0_i32 : i32, i32
  }
  func.func @transform_1(%arg0: i32) -> (i32, i32) {
    %c0_i32 = arith.constant 0 : i32
    %c0_i32_0 = arith.constant 0 : i32
    %c0_i32_1 = arith.constant 0 : i32
    return %c0_i32, %c0_i32_0 : i32, i32
  }
  func.func @transform_2(%arg0: i32) -> (i32, i32) {
    %c0_i32 = arith.constant 0 : i32
    %c0_i32_0 = arith.constant 0 : i32
    %c0_i32_1 = arith.constant 0 : i32
    return %c0_i32, %c0_i32_0 : i32, i32
  }
  func.func @transform_3(%arg0: i32) -> (i32, i32) {
    %c0_i32 = arith.constant 0 : i32
    %c0_i32_0 = arith.constant 0 : i32
    %c0_i32_1 = arith.constant 0 : i32
    return %c0_i32, %c0_i32_0 : i32, i32
  }
  func.func @transform_4(%arg0: i32) -> (i32, i32) {
    %c0_i32 = arith.constant 0 : i32
    %c0_i32_0 = arith.constant 0 : i32
    %c0_i32_1 = arith.constant 0 : i32
    return %c0_i32, %c0_i32_0 : i32, i32
  }
  func.func @transform_5(%arg0: i32) -> (i32, i32) {
    %c0_i32 = arith.constant 0 : i32
    %c0_i32_0 = arith.constant 0 : i32
    %c0_i32_1 = arith.constant 0 : i32
    return %c0_i32, %c0_i32_0 : i32, i32
  }
  func.func @transform_6(%arg0: i32) -> (i32, i32) {
    %c0_i32 = arith.constant 0 : i32
    %c0_i32_0 = arith.constant 0 : i32
    %c0_i32_1 = arith.constant 0 : i32
    return %c0_i32, %c0_i32_0 : i32, i32
  }
  func.func @transform_7(%arg0: i32) -> (i32, i32) {
    %c0_i32 = arith.constant 0 : i32
    %c0_i32_0 = arith.constant 0 : i32
    return %c0_i32, %arg0 : i32, i32
  }
}

</mosaic_0001>

<llo_original>
// kernel: tpu_custom_call.1
$region0: #{tpu_custom_call.1}
  #allocation0 [shape = 'u32[]', space=smem, size = 0x4, offset = 0x4, fixed_abs, tag = 'smem constant byte address 0x4 - core index']
  #allocation1 [shape = 'u32[144,128]{1,0:T(1,128)}', space=vmem, size = 0x12000, scoped, tag = 'internal scratch']
  #allocation2 [shape = 'f32[1,1]{1,0:T(1,128)S(6)}', space=smem, size = 0x200, scoped, tag = 'scoped memory for tpu_custom_call.1']
  %s0 = inlined_call_operand.vmem [shape: bf16[128,64], index: 0, kind: input, shape index: {}]
  %s1 = inlined_call_operand.vmem [shape: bf16[64,128], index: 1, kind: input, shape index: {}]
  %s2 = inlined_call_operand.vmem [shape: f32[1,128], index: 2, kind: input, shape index: {}]
  %s3 = inlined_call_operand.vmem [shape: bf16[128,128], index: 3, kind: input, shape index: {}]
  %s4 = inlined_call_operand.vmem [shape: f32[1,128], index: 4, kind: input, shape index: {}]
  %s5 = inlined_call_operand.vmem [shape: f32[1,128], index: 5, kind: input, shape index: {}]
  %s6 = inlined_call_operand.<no memory space> [shape: f32[1,1], index: 6, kind: input, shape index: {}]
  %s7 = inlined_call_operand.hbm [shape: f32[1,128], index: 7, kind: output, shape index: {}]
  %s8 = sld [smem:[#allocation0]]
  $region38: #{tpu_custom_call.1} parent=0
    _
  %s10 = ssub.s32 1, %s8
  %s11 = scalar_select 0, %s10, %s8
  %12 = sst [smem:[#allocation2]] %s6
  $region1: #{tpu_custom_call.1} parent=0
    #allocation3 [shape = 'u8[512]{0}', space=vmem, size = 0x400, scoped, tag = 'output window, operand 0, single buffered']
    #allocation4 [shape = 's32[1]{0}', space=sflag, size = 0x4, scoped, tag = 'scoped memory for tpu_custom_call.1']
    %13 = vsyncpa [#allocation4], 0
    // Predicated region
    $region2: #{tpu_custom_call.1} parent=1 // pred_check
      _
    $region3: #{tpu_custom_call.1} parent=1 // pred_check_branch
      %15 = sbr.rel (0) target = $region5
    $region4: #{tpu_custom_call.1} parent=1 // pred_region
      _
    $region5: #{tpu_custom_call.1} parent=1 // pred_fallthru
      _
    // Predicated region
    $region6: #{tpu_custom_call.1} parent=1 // pred_check
      _
    $region7: #{tpu_custom_call.1} parent=1 // pred_check_branch
      %17 = sbr.rel (0) target = $region9
    $region8: #{tpu_custom_call.1} parent=1 // pred_region
      _
    $region9: #{tpu_custom_call.1} parent=1 // pred_fallthru
      _
    // Predicated region
    $region10: #{tpu_custom_call.1} parent=1 // pred_check
      _
    $region11: #{tpu_custom_call.1} parent=1 // pred_check_branch
      %19 = sbr.rel (0) target = $region13
    $region12: #{tpu_custom_call.1} parent=1 // pred_region
      _
    $region13: #{tpu_custom_call.1} parent=1 // pred_fallthru
      _
    // Predicated region
    $region14: #{tpu_custom_call.1} parent=1 // pred_check
      _
    $region15: #{tpu_custom_call.1} parent=1 // pred_check_branch
      %21 = sbr.rel (0) target = $region17
    $region16: #{tpu_custom_call.1} parent=1 // pred_region
      _
    $region17: #{tpu_custom_call.1} parent=1 // pred_fallthru
      _
    // Predicated region
    $region18: #{tpu_custom_call.1} parent=1 // pred_check
      _
    $region19: #{tpu_custom_call.1} parent=1 // pred_check_branch
      %23 = sbr.rel (0) target = $region21
    $region20: #{tpu_custom_call.1} parent=1 // pred_region
      _
    $region21: #{tpu_custom_call.1} parent=1 // pred_fallthru
      _
    // Predicated region
    $region22: #{tpu_custom_call.1} parent=1 // pred_check
      _
    $region23: #{tpu_custom_call.1} parent=1 // pred_check_branch
      %25 = sbr.rel (0) target = $region25
    $region24: #{tpu_custom_call.1} parent=1 // pred_region
      _
    $region25: #{tpu_custom_call.1} parent=1 // pred_fallthru
      _
    // Predicated region
    $region26: #{tpu_custom_call.1} parent=1 // pred_check
      _
    $region27: #{tpu_custom_call.1} parent=1 // pred_check_branch
      %27 = sbr.rel (0) target = $region29
    $region28: #{tpu_custom_call.1} parent=1 // pred_region
      _
    $region29: #{tpu_custom_call.1} parent=1 // pred_fallthru
      _
    %v29 = vld [vmem:[%s0] sm:$0xf]
    %v30 = vld [vmem:[%s0 + $0x4] sm:$0xf]
    %v31 = vld [vmem:[%s0 + $0x8] sm:$0xf]
    %v32 = vld [vmem:[%s0 + $0xc] sm:$0xf]
    %v33 = vld [vmem:[%s0 + $0x10] sm:$0xf]
    %v34 = vld [vmem:[%s0 + $0x14] sm:$0xf]
    %v35 = vld [vmem:[%s0 + $0x18] sm:$0xf]
    %v36 = vld [vmem:[%s0 + $0x1c] sm:$0xf]
    %v37 = vld [vmem:[%s0 + $0x20] sm:$0xf]
    %v38 = vld [vmem:[%s0 + $0x24] sm:$0xf]
    %v39 = vld [vmem:[%s0 + $0x28] sm:$0xf]
    %v40 = vld [vmem:[%s0 + $0x2c] sm:$0xf]
    %v41 = vld [vmem:[%s0 + $0x30] sm:$0xf]
    %v42 = vld [vmem:[%s0 + $0x34] sm:$0xf]
    %v43 = vld [vmem:[%s0 + $0x38] sm:$0xf]
    %v44 = vld [vmem:[%s0 + $0x3c] sm:$0xf]
    %v45 = vld [vmem:[%s1] sm:$0xf]
    %v46 = vld [vmem:[%s1 + $0x4] sm:$0xf]
    %v47 = vld [vmem:[%s1 + $0x8] sm:$0xf]
    %v48 = vld [vmem:[%s1 + $0xc] sm:$0xf]
    %v49 = vld [vmem:[%s1 + $0x10] sm:$0xf]
    %v50 = vld [vmem:[%s1 + $0x14] sm:$0xf]
    %v51 = vld [vmem:[%s1 + $0x18] sm:$0xf]
    %v52 = vld [vmem:[%s1 + $0x1c] sm:$0xf]
    %v53 = vld [vmem:[%s2] sm:$0x1]
    %v55 = vlaneseq
    %v56 = vshrl.u32 %v55, 7
    %v57 = vsub.s32 0, %v56
    %v58 = vrot.slane %v53, %v57
    %v76 = vunpack.c.l.b16 %v29
    %v77 = vunpack.c.l.b16 %v30
    %v78 = vunpack.c.l.b16 %v31
    %v79 = vunpack.c.l.b16 %v32
    %v80 = vunpack.c.l.b16 %v33
    %v81 = vunpack.c.l.b16 %v34
    %v82 = vunpack.c.l.b16 %v35
    %v83 = vunpack.c.l.b16 %v36
    %v84 = vunpack.c.l.b16 %v37
    %v85 = vunpack.c.l.b16 %v38
    %v86 = vunpack.c.l.b16 %v39
    %v87 = vunpack.c.l.b16 %v40
    %v88 = vunpack.c.l.b16 %v41
    %v89 = vunpack.c.l.b16 %v42
    %v90 = vunpack.c.l.b16 %v43
    %v91 = vunpack.c.l.b16 %v44
    %v92 = vpack.c.b16 %v77, %v76
    %v93 = vpack.c.b16 %v79, %v78
    %v94 = vpack.c.b16 %v81, %v80
    %v95 = vpack.c.b16 %v83, %v82
    %v96 = vpack.c.b16 %v85, %v84
    %v97 = vpack.c.b16 %v87, %v86
    %v98 = vpack.c.b16 %v89, %v88
    %v99 = vpack.c.b16 %v91, %v90
    %v108 = vunpack.c.l.b16 %v45
    %v109 = vunpack.c.l.b16 %v46
    %v110 = vunpack.c.l.b16 %v47
    %v111 = vunpack.c.l.b16 %v48
    %v112 = vunpack.c.l.b16 %v49
    %v113 = vunpack.c.l.b16 %v50
    %v114 = vunpack.c.l.b16 %v51
    %v115 = vunpack.c.l.b16 %v52
    %v116 = vpack.c.b16 %v109, %v108
    %v117 = vpack.c.b16 %v111, %v110
    %v118 = vpack.c.b16 %v113, %v112
    %v119 = vpack.c.b16 %v115, %v114
    %vm124 = vcmask 523264
    %v126 = vsel %vm124, %v92, 0
    %v129 = vsel %vm124, %v93, 0
    %v132 = vsel %vm124, %v94, 0
    %v135 = vsel %vm124, %v95, 0
    %v138 = vsel %vm124, %v96, 0
    %v141 = vsel %vm124, %v97, 0
    %v144 = vsel %vm124, %v98, 0
    %v147 = vsel %vm124, %v99, 0
    %149 = vmatprep.subr.bf16.mxu0 0
    %150 = vmatpush1.bf16.msra.mxu0 %v116
    %151 = vmatprep.subr.bf16.mxu0 0
    %152 = vmatpush1.bf16.msra.mxu0 %v117
    %153 = vmatprep.subr.bf16.mxu0 0
    %154 = vmatpush1.bf16.msra.mxu0 %v118
    %155 = vmatprep.subr.bf16.mxu0 0
    %156 = vmatpush1.bf16.msra.mxu0 %v119
    %157 = vmatprep.subr.bf16.mxu0 0
    %158 = vmatpush1.bf16.msra.mxu0 0
    %159 = vmatprep.subr.bf16.mxu0 0
    %160 = vmatpush1.bf16.msra.mxu0 0
    %161 = vmatprep.subr.bf16.mxu0 0
    %162 = vmatpush1.bf16.msra.mxu0 0
    %163 = vmatprep.subr.bf16.mxu0 0
    %164 = vmatpush1.bf16.msra.mxu0 0
    %165 = vmatprep.subr.bf16.mxu0 0
    %166 = vmatpush1.bf16.msra.mxu0 0
    %167 = vmatprep.subr.bf16.mxu0 0
    %168 = vmatpush1.bf16.msra.mxu0 0
    %169 = vmatprep.subr.bf16.mxu0 0
    %170 = vmatpush1.bf16.msra.mxu0 0
    %171 = vmatprep.subr.bf16.mxu0 0
    %172 = vmatpush1.bf16.msra.mxu0 0
    %173 = vmatprep.subr.bf16.mxu0 0
    %174 = vmatpush1.bf16.msra.mxu0 0
    %175 = vmatprep.subr.bf16.mxu0 0
    %176 = vmatpush1.bf16.msra.mxu0 0
    %177 = vmatprep.subr.bf16.mxu0 0
    %178 = vmatpush1.bf16.msra.mxu0 0
    %179 = vmatprep.subr.bf16.mxu0 0
    %180 = vmatpush1.bf16.msra.mxu0 0
    %181 = vmatprep.mubr.bf16.mxu0 0
    %182 = vmatmul.mubr.bf16.gmra.mrb[0].mxu0 %v126
    %v183 = vpop.f32.mrb[0].mxu0
    %v184 = vadd.f32 %v58, %v183
    %v185 = vpop.f32.mrb[0].mxu0
    %v186 = vpop.f32.mrb[0].mxu0
    %v187 = vadd.f32 %v58, %v186
    %v188 = vpop.f32.mrb[0].mxu0
    %189 = vmatprep.mubr.bf16.mxu0 0
    %190 = vmatmul.mubr.bf16.gmra.mrb[0].mxu0 %v129
    %v191 = vpop.f32.mrb[0].mxu0
    %v192 = vadd.f32 %v58, %v191
    %v193 = vpop.f32.mrb[0].mxu0
    %v194 = vpop.f32.mrb[0].mxu0
    %v195 = vadd.f32 %v58, %v194
    %v196 = vpop.f32.mrb[0].mxu0
    %197 = vmatprep.mubr.bf16.mxu0 0
    %198 = vmatmul.mubr.bf16.gmra.mrb[0].mxu0 %v132
    %v199 = vpop.f32.mrb[0].mxu0
    %v200 = vadd.f32 %v58, %v199
    %v201 = vpop.f32.mrb[0].mxu0
    %v202 = vpop.f32.mrb[0].mxu0
    %v203 = vadd.f32 %v58, %v202
    %v204 = vpop.f32.mrb[0].mxu0
    %205 = vmatprep.mubr.bf16.mxu0 0
    %206 = vmatmul.mubr.bf16.gmra.mrb[0].mxu0 %v135
    %v207 = vpop.f32.mrb[0].mxu0
    %v208 = vadd.f32 %v58, %v207
    %v209 = vpop.f32.mrb[0].mxu0
    %v210 = vpop.f32.mrb[0].mxu0
    %v211 = vadd.f32 %v58, %v210
    %v212 = vpop.f32.mrb[0].mxu0
    %213 = vmatprep.mubr.bf16.mxu0 0
    %214 = vmatmul.mubr.bf16.gmra.mrb[0].mxu0 %v138
    %v215 = vpop.f32.mrb[0].mxu0
    %v216 = vadd.f32 %v58, %v215
    %v217 = vpop.f32.mrb[0].mxu0
    %v218 = vpop.f32.mrb[0].mxu0
    %v219 = vadd.f32 %v58, %v218
    %v220 = vpop.f32.mrb[0].mxu0
    %221 = vmatprep.mubr.bf16.mxu0 0
    %222 = vmatmul.mubr.bf16.gmra.mrb[0].mxu0 %v141
    %v223 = vpop.f32.mrb[0].mxu0
    %v224 = vadd.f32 %v58, %v223
    %v225 = vpop.f32.mrb[0].mxu0
    %v226 = vpop.f32.mrb[0].mxu0
    %v227 = vadd.f32 %v58, %v226
    %v228 = vpop.f32.mrb[0].mxu0
    %229 = vmatprep.mubr.bf16.mxu0 0
    %230 = vmatmul.mubr.bf16.gmra.mrb[0].mxu0 %v144
    %v231 = vpop.f32.mrb[0].mxu0
    %v232 = vadd.f32 %v58, %v231
    %v233 = vpop.f32.mrb[0].mxu0
    %v234 = vpop.f32.mrb[0].mxu0
    %v235 = vadd.f32 %v58, %v234
    %v236 = vpop.f32.mrb[0].mxu0
    %237 = vmatprep.mubr.bf16.mxu0 0
    %238 = vmatmul.mubr.bf16.gmra.mrb[0].mxu0 %v147
    %v239 = vpop.f32.mrb[0].mxu0
    %v240 = vadd.f32 %v58, %v239
    %v241 = vpop.f32.mrb[0].mxu0
    %v242 = vpop.f32.mrb[0].mxu0
    %v243 = vadd.f32 %v58, %v242
    %v244 = vpop.f32.mrb[0].mxu0
    %245 = vdwg.mxu0
    %v246 = vmax.f32 %v184, 0.0
    %v247 = vmax.f32 %v187, 0.0
    %v248 = vmax.f32 %v192, 0.0
    %v249 = vmax.f32 %v195, 0.0
    %v250 = vmax.f32 %v200, 0.0
    %v251 = vmax.f32 %v203, 0.0
    %v252 = vmax.f32 %v208, 0.0
    %v253 = vmax.f32 %v211, 0.0
    %v254 = vmax.f32 %v216, 0.0
    %v255 = vmax.f32 %v219, 0.0
    %v256 = vmax.f32 %v224, 0.0
    %v257 = vmax.f32 %v227, 0.0
    %v258 = vmax.f32 %v232, 0.0
    %v259 = vmax.f32 %v235, 0.0
    %v260 = vmax.f32 %v240, 0.0
    %v261 = vmax.f32 %v243, 0.0
    %v262 = vpack.c.bf16 %v247, %v246
    %v263 = vpack.c.bf16 %v249, %v248
    %v264 = vpack.c.bf16 %v251, %v250
    %v265 = vpack.c.bf16 %v253, %v252
    %v266 = vpack.c.bf16 %v255, %v254
    %v267 = vpack.c.bf16 %v257, %v256
    %v268 = vpack.c.bf16 %v259, %v258
    %v269 = vpack.c.bf16 %v261, %v260
    %v270 = vld [vmem:[%s3] sm:$0xf]
    %v271 = vld [vmem:[%s3 + $0x4] sm:$0xf]
    %v272 = vld [vmem:[%s3 + $0x8] sm:$0xf]
    %v273 = vld [vmem:[%s3 + $0xc] sm:$0xf]
    %v274 = vld [vmem:[%s3 + $0x10] sm:$0xf]
    %v275 = vld [vmem:[%s3 + $0x14] sm:$0xf]
    %v276 = vld [vmem:[%s3 + $0x18] sm:$0xf]
    %v277 = vld [vmem:[%s3 + $0x1c] sm:$0xf]
    %v278 = vld [vmem:[%s3 + $0x20] sm:$0xf]
    %v279 = vld [vmem:[%s3 + $0x24] sm:$0xf]
    %v280 = vld [vmem:[%s3 + $0x28] sm:$0xf]
    %v281 = vld [vmem:[%s3 + $0x2c] sm:$0xf]
    %v282 = vld [vmem:[%s3 + $0x30] sm:$0xf]
    %v283 = vld [vmem:[%s3 + $0x34] sm:$0xf]
    %v284 = vld [vmem:[%s3 + $0x38] sm:$0xf]
    %v285 = vld [vmem:[%s3 + $0x3c] sm:$0xf]
    %v286 = vld [vmem:[%s4] sm:$0x1]
    %v288 = vlaneseq
    %v289 = vshrl.u32 %v288, 7
    %v290 = vsub.s32 0, %v289
    %v291 = vrot.slane %v286, %v290
    %v309 = vunpack.c.l.b16 %v270
    %v310 = vunpack.c.l.b16 %v271
    %v311 = vunpack.c.l.b16 %v272
    %v312 = vunpack.c.l.b16 %v273
    %v313 = vunpack.c.l.b16 %v274
    %v314 = vunpack.c.l.b16 %v275
    %v315 = vunpack.c.l.b16 %v276
    %v316 = vunpack.c.l.b16 %v277
    %v317 = vunpack.c.l.b16 %v278
    %v318 = vunpack.c.l.b16 %v279
    %v319 = vunpack.c.l.b16 %v280
    %v320 = vunpack.c.l.b16 %v281
    %v321 = vunpack.c.l.b16 %v282
    %v322 = vunpack.c.l.b16 %v283
    %v323 = vunpack.c.l.b16 %v284
    %v324 = vunpack.c.l.b16 %v285
    %v325 = vpack.c.b16 %v310, %v309
    %v326 = vpack.c.b16 %v312, %v311
    %v327 = vpack.c.b16 %v314, %v313
    %v328 = vpack.c.b16 %v316, %v315
    %v329 = vpack.c.b16 %v318, %v317
    %v330 = vpack.c.b16 %v320, %v319
    %v331 = vpack.c.b16 %v322, %v321
    %v332 = vpack.c.b16 %v324, %v323
    %341 = vmatprep.subr.bf16.mxu0 0
    %342 = vmatpush1.bf16.msra.mxu0 %v325
    %343 = vmatprep.subr.bf16.mxu0 0
    %344 = vmatpush1.bf16.msra.mxu0 %v326
    %345 = vmatprep.subr.bf16.mxu0 0
    %346 = vmatpush1.bf16.msra.mxu0 %v327
    %347 = vmatprep.subr.bf16.mxu0 0
    %348 = vmatpush1.bf16.msra.mxu0 %v328
    %349 = vmatprep.subr.bf16.mxu0 0
    %350 = vmatpush1.bf16.msra.mxu0 %v329
    %351 = vmatprep.subr.bf16.mxu0 0
    %352 = vmatpush1.bf16.msra.mxu0 %v330
    %353 = vmatprep.subr.bf16.mxu0 0
    %354 = vmatpush1.bf16.msra.mxu0 %v331
    %355 = vmatprep.subr.bf16.mxu0 0
    %356 = vmatpush1.bf16.msra.mxu0 %v332
    %357 = vmatprep.subr.bf16.mxu0 0
    %358 = vmatpush1.bf16.msra.mxu0 0
    %359 = vmatprep.subr.bf16.mxu0 0
    %360 = vmatpush1.bf16.msra.mxu0 0
    %361 = vmatprep.subr.bf16.mxu0 0
    %362 = vmatpush1.bf16.msra.mxu0 0
    %363 = vmatprep.subr.bf16.mxu0 0
    %364 = vmatpush1.bf16.msra.mxu0 0
    %365 = vmatprep.subr.bf16.mxu0 0
    %366 = vmatpush1.bf16.msra.mxu0 0
    %367 = vmatprep.subr.bf16.mxu0 0
    %368 = vmatpush1.bf16.msra.mxu0 0
    %369 = vmatprep.subr.bf16.mxu0 0
    %370 = vmatpush1.bf16.msra.mxu0 0
    %371 = vmatprep.subr.bf16.mxu0 0
    %372 = vmatpush1.bf16.msra.mxu0 0
    %373 = vmatprep.mubr.bf16.mxu0 0
    %374 = vmatmul.mubr.bf16.gmra.mrb[0].mxu0 %v262
    %v375 = vpop.f32.mrb[0].mxu0
    %v376 = vadd.f32 %v291, %v375
    %v377 = vpop.f32.mrb[0].mxu0
    %v378 = vpop.f32.mrb[0].mxu0
    %v379 = vadd.f32 %v291, %v378
    %v380 = vpop.f32.mrb[0].mxu0
    %381 = vmatprep.mubr.bf16.mxu0 0
    %382 = vmatmul.mubr.bf16.gmra.mrb[0].mxu0 %v263
    %v383 = vpop.f32.mrb[0].mxu0
    %v384 = vadd.f32 %v291, %v383
    %v385 = vpop.f32.mrb[0].mxu0
    %v386 = vpop.f32.mrb[0].mxu0
    %v387 = vadd.f32 %v291, %v386
    %v388 = vpop.f32.mrb[0].mxu0
    %389 = vmatprep.mubr.bf16.mxu0 0
    %390 = vmatmul.mubr.bf16.gmra.mrb[0].mxu0 %v264
    %v391 = vpop.f32.mrb[0].mxu0
    %v392 = vadd.f32 %v291, %v391
    %v393 = vpop.f32.mrb[0].mxu0
    %v394 = vpop.f32.mrb[0].mxu0
    %v395 = vadd.f32 %v291, %v394
    %v396 = vpop.f32.mrb[0].mxu0
    %397 = vmatprep.mubr.bf16.mxu0 0
    %398 = vmatmul.mubr.bf16.gmra.mrb[0].mxu0 %v265
    %v399 = vpop.f32.mrb[0].mxu0
    %v400 = vadd.f32 %v291, %v399
    %v401 = vpop.f32.mrb[0].mxu0
    %v402 = vpop.f32.mrb[0].mxu0
    %v403 = vadd.f32 %v291, %v402
    %v404 = vpop.f32.mrb[0].mxu0
    %405 = vmatprep.mubr.bf16.mxu0 0
    %406 = vmatmul.mubr.bf16.gmra.mrb[0].mxu0 %v266
    %v407 = vpop.f32.mrb[0].mxu0
    %v408 = vadd.f32 %v291, %v407
    %v409 = vpop.f32.mrb[0].mxu0
    %v410 = vpop.f32.mrb[0].mxu0
    %v411 = vadd.f32 %v291, %v410
    %v412 = vpop.f32.mrb[0].mxu0
    %413 = vmatprep.mubr.bf16.mxu0 0
    %414 = vmatmul.mubr.bf16.gmra.mrb[0].mxu0 %v267
    %v415 = vpop.f32.mrb[0].mxu0
    %v416 = vadd.f32 %v291, %v415
    %v417 = vpop.f32.mrb[0].mxu0
    %v418 = vpop.f32.mrb[0].mxu0
    %v419 = vadd.f32 %v291, %v418
    %v420 = vpop.f32.mrb[0].mxu0
    %421 = vmatprep.mubr.bf16.mxu0 0
    %422 = vmatmul.mubr.bf16.gmra.mrb[0].mxu0 %v268
    %v423 = vpop.f32.mrb[0].mxu0
    %v424 = vadd.f32 %v291, %v423
    %v425 = vpop.f32.mrb[0].mxu0
    %v426 = vpop.f32.mrb[0].mxu0
    %v427 = vadd.f32 %v291, %v426
    %v428 = vpop.f32.mrb[0].mxu0
    %429 = vmatprep.mubr.bf16.mxu0 0
    %430 = vmatmul.mubr.bf16.gmra.mrb[0].mxu0 %v269
    %v431 = vpop.f32.mrb[0].mxu0
    %v432 = vadd.f32 %v291, %v431
    %v433 = vpop.f32.mrb[0].mxu0
    %v434 = vpop.f32.mrb[0].mxu0
    %v435 = vadd.f32 %v291, %v434
    %v436 = vpop.f32.mrb[0].mxu0
    %437 = vdwg.mxu0
    %v438 = vmax.f32 %v376, 0.0
    %v439 = vmax.f32 %v379, 0.0
    %v440 = vmax.f32 %v384, 0.0
    %v441 = vmax.f32 %v387, 0.0
    %v442 = vmax.f32 %v392, 0.0
    %v443 = vmax.f32 %v395, 0.0
    %v444 = vmax.f32 %v400, 0.0
    %v445 = vmax.f32 %v403, 0.0
    %v446 = vmax.f32 %v408, 0.0
    %v447 = vmax.f32 %v411, 0.0
    %v448 = vmax.f32 %v416, 0.0
    %v449 = vmax.f32 %v419, 0.0
    %v450 = vmax.f32 %v424, 0.0
    %v451 = vmax.f32 %v427, 0.0
    %v452 = vmax.f32 %v432, 0.0
    %v453 = vmax.f32 %v435, 0.0
    %v454 = vld [vmem:[%s5] sm:$0x1]
    %s455 = sld [smem:[#allocation2]]
    %v456 = vstv %s455
    %457 = vmatprep.subr.mxu0 0.0
    %458 = vmatpush1.xpose.msra.mxu0 %v438
    %459 = vmatprep.subr.mxu0 0.0
    %460 = vmatpush1.xpose.msra.mxu0 %v439
    %461 = vmatprep.subr.mxu0 0.0
    %462 = vmatpush1.xpose.msra.mxu0 %v440
    %463 = vmatprep.subr.mxu0 0.0
    %464 = vmatpush1.xpose.msra.mxu0 %v441
    %465 = vmatprep.subr.mxu0 0.0
    %466 = vmatpush1.xpose.msra.mxu0 %v442
    %467 = vmatprep.subr.mxu0 0.0
    %468 = vmatpush1.xpose.msra.mxu0 %v443
    %469 = vmatprep.subr.mxu0 0.0
    %470 = vmatpush1.xpose.msra.mxu0 %v444
    %471 = vmatprep.subr.mxu0 0.0
    %472 = vmatpush1.xpose.msra.mxu0 %v445
    %473 = vmatprep.subr.mxu0 0.0
    %474 = vmatpush1.xpose.msra.mxu0 %v446
    %475 = vmatprep.subr.mxu0 0.0
    %476 = vmatpush1.xpose.msra.mxu0 %v447
    %477 = vmatprep.subr.mxu0 0.0
    %478 = vmatpush1.xpose.msra.mxu0 %v448
    %479 = vmatprep.subr.mxu0 0.0
    %480 = vmatpush1.xpose.msra.mxu0 %v449
    %481 = vmatprep.subr.mxu0 0.0
    %482 = vmatpush1.xpose.msra.mxu0 %v450
    %483 = vmatprep.subr.mxu0 0.0
    %484 = vmatpush1.xpose.msra.mxu0 %v451
    %485 = vmatprep.subr.mxu0 0.0
    %486 = vmatpush1.xpose.msra.mxu0 %v452
    %487 = vmatprep.subr.mxu0 0.0
    %488 = vmatpush1.xpose.msra.mxu0 %v453
    %489 = vmatprep.subr.mxu0 0.0
    %490 = vmatpush1.xpose.msra.mxu0 0.0
    %491 = vmatprep.subr.mxu0 0.0
    %492 = vmatpush1.xpose.msra.mxu0 0.0
    %493 = vmatprep.subr.mxu0 0.0
    %494 = vmatpush1.xpose.msra.mxu0 0.0
    %495 = vmatprep.subr.mxu0 0.0
    %496 = vmatpush1.xpose.msra.mxu0 0.0
    %497 = vmatprep.subr.mxu0 0.0
    %498 = vmatpush1.xpose.msra.mxu0 0.0
    %499 = vmatprep.subr.mxu0 0.0
    %500 = vmatpush1.xpose.msra.mxu0 0.0
    %501 = vmatprep.subr.mxu0 0.0
    %502 = vmatpush1.xpose.msra.mxu0 0.0
    %503 = vmatprep.subr.mxu0 0.0
    %504 = vmatpush1.xpose.msra.mxu0 0.0
    %505 = vmatprep.subr.mxu0 0.0
    %506 = vmatpush1.xpose.msra.mxu0 0.0
    %507 = vmatprep.subr.mxu0 0.0
    %508 = vmatpush1.xpose.msra.mxu0 0.0
    %509 = vmatprep.subr.mxu0 0.0
    %510 = vmatpush1.xpose.msra.mxu0 0.0
    %511 = vmatprep.subr.mxu0 0.0
    %512 = vmatpush1.xpose.msra.mxu0 0.0
    %513 = vmatprep.subr.mxu0 0.0
    %514 = vmatpush1.xpose.msra.mxu0 0.0
    %515 = vmatprep.subr.mxu0 0.0
    %516 = vmatpush1.xpose.msra.mxu0 0.0
    %517 = vmatprep.subr.mxu0 0.0
    %518 = vmatpush1.xpose.msra.mxu0 0.0
    %519 = vmatprep.subr.mxu0 0.0
    %520 = vmatpush1.xpose.msra.mxu0 0.0
    %521 = vmatprep.mubr.f32.mxu0 0.0
    %522 = vmatmul.mubr.f32.gmra.mrb[0].mxu0 %v454
    %v523 = vpop.f32.mrb[0].mxu0
    %v524 = vadd.f32 %v456, %v523
    %v525 = vpop.f32.mrb[0].mxu0
    %526 = vdwg.mxu0
    %v527 = vxor.u32 %v524, 2147483648
    %v528 = vmul.f32 %v527, 1.442695
    %v529 = vpow.pop %v528
    %v530 = vadd.f32 %v529, 1.0
    %v531 = vrcp.pop %v530
    %v532 = vmul.f32 1.0, %v531
    %533 = vst [vmem:[#allocation3] sm:$0x1] %v532
    // Predicated region
    $region30: #{tpu_custom_call.1} parent=1 // pred_check
      _
    $region31: #{tpu_custom_call.1} parent=1 // pred_check_branch
      %535 = sbr.rel (0) target = $region33
    $region32: #{tpu_custom_call.1} parent=1 // pred_region
      %s537 = ssub.s32 16, 16
      %538 = vsyncadd [#allocation4], %s537
      %s540 = sshll.u32 [#allocation3], 4
      %s541 = int_to_ptr.vmem [resolvable:$true] %s540
      %543 = dma.vmem_to_hbm [thread:$0]  %s541, 16, %s7, [#allocation4]
    $region33: #{tpu_custom_call.1} parent=1 // pred_fallthru
      _
    // Predicated region
    $region34: #{tpu_custom_call.1} parent=1 // pred_check
      _
    $region35: #{tpu_custom_call.1} parent=1 // pred_check_branch
      %545 = sbr.rel (0) target = $region37
    $region36: #{tpu_custom_call.1} parent=1 // pred_region
      %546 = dma.done [#allocation4], 16
    $region37: #{tpu_custom_call.1} parent=1 // pred_fallthru
      _
    %547 = vsyncpa [#allocation4], 1

</llo_original>
